<compile_context>
chip_gen: v7x
topology: tpu7x:2x2x1
jax: 0.10.0
libtpu: 0.0.40
codegen_flags: <defaults>
</compile_context>

<pallas_src>
import functools
import math

import jax
import jax.numpy as jnp
from jax import lax
from jax.experimental import pallas as pl
from jax.experimental.pallas import tpu as pltpu


def _patch_expand_kernel(x_ref, w_ref, sa_ref, pm_ref, ps_ref, beta_ref, o_ref,
                         *, c4, w_tokens, eps, matmul_dtype):
    # x_ref    : (T, C)        token tile (native dtype), T = rows_per_block * W
    # w_ref    : (C, C_out)    pre-transposed Linear weight (matmul dtype)
    # sa_ref   : (C_out, 4)    per-(p1,p2)-segment averaging matrix       (f32)
    # pm_ref   : (4, C_out)    segment -> channel broadcast matrix        (f32)
    # ps_ref   : (4, C_out)    broadcast matrix pre-scaled by gamma       (f32)
    # beta_ref : (1, C_out)    LayerNorm beta, tiled 4x                   (f32)
    # o_ref    : (rpb, 2, W, 2*c4) output tile, p1-major subpixel layout
    c_out = 4 * c4
    rpb = o_ref.shape[0]

    # ---- expand: Linear(C -> C_out) on the MXU, f32 accumulation ------------
    x = x_ref[...]
    if x.dtype != jnp.dtype(matmul_dtype):
        x = x.astype(matmul_dtype)            # in-kernel VPU cast, hidden under DMA
    y = jnp.dot(x, w_ref[...], preferred_element_type=jnp.float32)      # (T, C_out)

    # ---- per-segment LayerNorm (segment j == subpixel (p1, p2)) -------------
    # Stats via tiny matmuls so all math stays full lane width; two-pass
    # variance E[(y - mu)^2] to avoid catastrophic cancellation.
    mu4 = jnp.dot(y, sa_ref[...], preferred_element_type=jnp.float32)       # (T, 4)
    mu_f = jnp.dot(mu4, pm_ref[...], preferred_element_type=jnp.float32)    # (T, C_out)
    d = y - mu_f
    var4 = jnp.dot(d * d, sa_ref[...], preferred_element_type=jnp.float32)  # (T, 4)
    rstd4 = lax.rsqrt(var4 + eps)
    scale_f = jnp.dot(rstd4, ps_ref[...], preferred_element_type=jnp.float32)  # rstd*gamma
    z = d * scale_f + beta_ref[...]                                          # (T, C_out) f32

    # ---- fused pixel shuffle: channel halves (p1) -> output planes ----------
    # (T, C_out) -> (rpb, 1, W, C_out) is a free sublane-split view when
    # W % 8 == 0 (relayout fallback otherwise).  Output dtype cast at the store.
    z4 = z.reshape(rpb, 1, w_tokens, c_out)
    o_ref[:, 0:1, :, :] = z4[..., : 2 * c4].astype(o_ref.dtype)
    o_ref[:, 1:2, :, :] = z4[..., 2 * c4:].astype(o_ref.dtype)


def _vmem_budgets():
    """Per-generation VMEM budgets -> (max_block_bytes, vmem_limit_bytes)."""
    try:
        phys = getattr(pltpu.get_tpu_info(), "vmem_capacity_bytes", None)
    except Exception:
        phys = None
    if not phys:
        phys = 64 << 20                            # unknown -> assume smallest (v7x per-TC)
    vmem_limit = int(min(phys * 3 // 4, 96 << 20))  # ~48 MiB on v7x, ~96 MiB on v5e/v6e
    return vmem_limit // 2, vmem_limit              # ~24 / ~48 MiB row-tile budget


def _pick_rows_per_block(rows, w_tokens, c_in, c_out, x_itemsize, w_itemsize,
                         out_itemsize, target_tokens, max_block_bytes):
    """Whole-row tile size under (a) a token-count target, (b) a VMEM budget that
    counts double-buffered blocks, lane padding of the out block and f32
    intermediates, (c) a minimum grid length (>=4 steps where possible, even
    preferred for v7x megacore), and (d) the (8,128) sublane rule for the x block."""
    c4 = c_out // 4
    lane_padded = pl.cdiv(2 * c4, 128) * 128            # lane padding of the VMEM out block
    per_token = (2 * c_in * x_itemsize                  # double-buffered input block (native dtype)
                 + 2 * 2 * lane_padded * out_itemsize   # double-buffered, lane-padded output block
                 + 8 * c_out * 4)                       # f32 intermediates (y, d, d*d, mu_f, scale_f, z, ...)
    fixed = 2 * c_in * c_out * w_itemsize + 6 * c_out * 4 * 4   # weight + LN helper constants
    budget = max(max_block_bytes - fixed, per_token * w_tokens)
    by_budget = max(int(budget // (per_token * w_tokens)), 1)
    by_tokens = max(target_tokens // w_tokens, 1)
    min_grid = min(rows, 4)                              # keep pipeline / both v7x TCs busy
    by_grid = max(rows // min_grid, 1)
    rpb = max(1, min(by_budget, by_tokens, by_grid))

    # x block sublane dim (rpb*W) must be a multiple of 8 (or cover the array).
    need = 8 // math.gcd(w_tokens, 8)
    rpb = max(need, (rpb // need) * need)
    if rpb >= rows:
        return rows                                      # single full block (still legal)
    for cand in range(rpb, max(rpb - 4 * need, 0), -need):  # prefer an even grid
        if pl.cdiv(rows, cand) % 2 == 0:
            return cand
    return rpb


def patch_expand(x, w_t, gamma, beta, *, input_resolution, dim_scale=4, eps=1e-5,
                 matmul_dtype=jnp.bfloat16, out_dtype=None,
                 target_tokens_per_block=4096, max_block_bytes=None,
                 vmem_limit_bytes=None):
    """PatchExpand forward.

    x     : (B, H*W, C) tokens.  Matmul inputs are cast to `matmul_dtype`
            *inside* the kernel (bf16 by default, i.e. f32 activations are
            rounded — a deliberate semantics choice; pass matmul_dtype=f32 for
            exact f32).
    w_t   : (C, C_out) = nn.Linear(dim, dim_scale*dim//4, bias=False).weight.T
    gamma, beta : (C_out//4,) LayerNorm affine params.
    out_dtype   : output dtype (default x.dtype).  Use bf16 in bf16 models —
            the output write is the largest HBM stream.
    Returns (B, 4*H*W, C_out//4).
    """
    if isinstance(input_resolution, int):
        h = w = input_resolution
    else:
        h, w = input_resolution
    b, l, c = x.shape
    assert l == h * w, 'input feature has wrong size'
    assert dim_scale == 4, 'PatchExpand shapes only self-consistent for dim_scale=4'
    c_out = w_t.shape[1]
    assert c_out == dim_scale * c // 4 and c_out % 4 == 0
    c4 = c_out // 4
    assert gamma.shape == (c4,) and beta.shape == (c4,)

    out_dtype = jnp.dtype(x.dtype if out_dtype is None else out_dtype)
    auto_block, auto_limit = _vmem_budgets()
    if max_block_bytes is None:
        max_block_bytes = auto_block
    if vmem_limit_bytes is None:
        vmem_limit_bytes = auto_limit

    x_flat = x.reshape(b * l, c)                  # free view; NO dtype cast here
    w_in = w_t.astype(matmul_dtype)               # tiny one-off cast (weight only)

    # LayerNorm helper constants, hoisted out of the kernel body.
    seg = jnp.arange(c_out, dtype=jnp.int32) // c4
    s_avg = (seg[:, None] == jnp.arange(4, dtype=jnp.int32)[None, :]
             ).astype(jnp.float32) / c4                                 # (C_out, 4)
    p_mean = (jnp.arange(4, dtype=jnp.int32)[:, None] == seg[None, :]
              ).astype(jnp.float32)                                     # (4, C_out)
    gamma_full = jnp.tile(gamma.astype(jnp.float32), 4)
    p_scale = p_mean * gamma_full[None, :]                              # gamma folded in
    beta_full = jnp.tile(beta.astype(jnp.float32), 4).reshape(1, c_out)

    rows = b * h                                  # one "row" = W tokens
    rpb = _pick_rows_per_block(
        rows, w, c, c_out,
        jnp.dtype(x.dtype).itemsize, jnp.dtype(matmul_dtype).itemsize,
        out_dtype.itemsize, target_tokens_per_block, max_block_bytes)
    grid = (int(pl.cdiv(rows, rpb)),)             # ragged last block is fine

    kernel = functools.partial(_patch_expand_kernel, c4=c4, w_tokens=w, eps=eps,
                               matmul_dtype=matmul_dtype)

    y = pl.pallas_call(
        kernel,
        out_shape=jax.ShapeDtypeStruct((rows, 2, w, 2 * c4), out_dtype),
        grid_spec=pltpu.PrefetchScalarGridSpec(
            num_scalar_prefetch=0,
            grid=grid,
            in_specs=[
                pl.BlockSpec((rpb * w, c), lambda i: (i, 0)),
                # weight / LN constants: constant index maps -> fetched once,
                # not re-DMA'd per grid step.
                pl.BlockSpec((c, c_out), lambda i: (0, 0)),
                pl.BlockSpec((c_out, 4), lambda i: (0, 0)),
                pl.BlockSpec((4, c_out), lambda i: (0, 0)),
                pl.BlockSpec((4, c_out), lambda i: (0, 0)),
                pl.BlockSpec((1, c_out), lambda i: (0, 0)),
            ],
            out_specs=pl.BlockSpec((rpb, 2, w, 2 * c4), lambda i: (i, 0, 0, 0)),
        ),
        compiler_params=pltpu.CompilerParams(
            dimension_semantics=("parallel",),    # row tiles shard across v7x TCs
            vmem_limit_bytes=int(vmem_limit_bytes),
        ),
    )(x_flat, w_in, s_avg, p_mean, p_scale, beta_full)

    # Pure contiguous reshape: (B*H, 2, W, 2*c4) == (B, 2H, 2W, c4) in memory.
    return y.reshape(b, 4 * h * w, c4)


def _reference(x, w_t, gamma, beta, input_resolution, eps=1e-5):
    b, l, c = x.shape
    h, w = input_resolution
    y = jnp.dot(x, w_t, precision=lax.Precision.HIGHEST)
    c_out = y.shape[-1]
    c4 = c_out // 4
    y = y.reshape(b, h, w, 2, 2, c4)
    y = jnp.transpose(y, (0, 1, 3, 2, 4, 5)).reshape(b, 4 * h * w, c4)
    mu = jnp.mean(y, axis=-1, keepdims=True)
    var = jnp.mean((y - mu) ** 2, axis=-1, keepdims=True)
    return (y - mu) / jnp.sqrt(var + eps) * gamma + beta


if __name__ == "__main__":
    # PatchExpand(input_resolution=8, dim=128, dim_scale=4)
    B, H, W, DIM = 2, 8, 8, 128
    DIM_SCALE = 4
    C_OUT = DIM_SCALE * DIM // 4          # 128
    C4 = C_OUT // 4                       # 32 (= dim // dim_scale)

    key = jax.random.PRNGKey(0)
    kx, kw, kg, kb = jax.random.split(key, 4)
    x = jax.random.normal(kx, (B, H * W, DIM), dtype=jnp.float32)
    # nn.Linear(dim, c_out, bias=False): weight (c_out, dim); pass transposed.
    w_lin = jax.random.normal(kw, (C_OUT, DIM), dtype=jnp.float32) * (DIM ** -0.5)
    w_t = w_lin.T
    gamma = 1.0 + 0.05 * jax.random.normal(kg, (C4,), dtype=jnp.float32)
    beta = 0.05 * jax.random.normal(kb, (C4,), dtype=jnp.float32)

    ref_f32 = _reference(x, w_t, gamma, beta, (H, W))
    ref_bf16 = _reference(x.astype(jnp.bfloat16).astype(jnp.float32),
                          w_t.astype(jnp.bfloat16).astype(jnp.float32),
                          gamma, beta, (H, W))

    # f32 matmul path.
    out_f32 = patch_expand(x, w_t, gamma, beta, input_resolution=(H, W),
                           dim_scale=DIM_SCALE, matmul_dtype=jnp.float32)
    out_f32 = jax.block_until_ready(out_f32)
    assert out_f32.shape == (B, 4 * H * W, C4), out_f32.shape
    assert jnp.allclose(out_f32, ref_f32, atol=1e-2, rtol=1e-2)

    # default bf16 matmul path (in-kernel cast, f32 output).
    out_bf16 = patch_expand(x, w_t, gamma, beta, input_resolution=(H, W),
                            dim_scale=DIM_SCALE)
    out_bf16 = jax.block_until_ready(out_bf16)
    assert out_bf16.shape == (B, 4 * H * W, C4), out_bf16.shape
    assert jnp.allclose(out_bf16, ref_bf16, atol=1e-2, rtol=1e-2)

    # bf16 matmul + bf16 output (halves the dominant HBM write stream).
    out_bf16o = patch_expand(x, w_t, gamma, beta, input_resolution=(H, W),
                             dim_scale=DIM_SCALE, out_dtype=jnp.bfloat16)
    out_bf16o = jax.block_until_ready(out_bf16o)
    assert out_bf16o.dtype == jnp.bfloat16
    assert jnp.allclose(out_bf16o.astype(jnp.float32), ref_bf16, atol=5e-2, rtol=5e-2)

    print("KERNEL_OK")
</pallas_src>

<mosaic_0001>
module attributes {stable_mosaic.version = 11 : i64} {
  func.func @_patch_expand_kernel(%arg0: i32, %arg1: memref<32x128xf32, #tpu.memory_space<vmem>>, %arg2: memref<128x128xf32, #tpu.memory_space<vmem>>, %arg3: memref<128x4xf32, #tpu.memory_space<vmem>>, %arg4: memref<4x128xf32, #tpu.memory_space<vmem>>, %arg5: memref<4x128xf32, #tpu.memory_space<vmem>>, %arg6: memref<1x128xf32, #tpu.memory_space<vmem>>, %arg7: memref<4x2x8x64xf32, #tpu.memory_space<vmem>>) attributes {dimension_semantics = [#tpu.dimension_semantics<parallel>], iteration_bounds = array<i64: 4>, scalar_prefetch = 0 : i64, scratch_operands = 0 : i64, tpu.core_type = #tpu.core_type<tc>, window_params = [{transform_indices = @transform_0, window_bounds = array<i64: 32, 128>}, {pipeline_mode = #tpu.pipeline_mode<synchronous>, transform_indices = @transform_1, window_bounds = array<i64: 128, 128>}, {pipeline_mode = #tpu.pipeline_mode<synchronous>, transform_indices = @transform_2, window_bounds = array<i64: 128, 4>}, {pipeline_mode = #tpu.pipeline_mode<synchronous>, transform_indices = @transform_3, window_bounds = array<i64: 4, 128>}, {pipeline_mode = #tpu.pipeline_mode<synchronous>, transform_indices = @transform_4, window_bounds = array<i64: 4, 128>}, {pipeline_mode = #tpu.pipeline_mode<synchronous>, transform_indices = @transform_5, window_bounds = array<i64: 1, 128>}, {transform_indices = @transform_6, window_bounds = array<i64: 4, 2, 8, 64>}]} {
    %c0 = arith.constant 0 : index
    %c0_0 = arith.constant 0 : index
    %0 = vector.load %arg1[%c0, %c0_0] : memref<32x128xf32, #tpu.memory_space<vmem>>, vector<32x128xf32>
    %c0_1 = arith.constant 0 : index
    %c0_2 = arith.constant 0 : index
    %1 = vector.load %arg2[%c0_1, %c0_2] : memref<128x128xf32, #tpu.memory_space<vmem>>, vector<128x128xf32>
    %cst = arith.constant dense<0.000000e+00> : vector<32x128xf32>
    %2 = tpu.matmul %0, %1, %cst {dimension_numbers = #tpu.dot_dimension_numbers<[1], [0], [0], [1], [0, 0, 1, 1], [], []>} : vector<32x128xf32>, vector<128x128xf32>, vector<32x128xf32> -> vector<32x128xf32>
    %c0_3 = arith.constant 0 : index
    %c0_4 = arith.constant 0 : index
    %3 = vector.load %arg3[%c0_3, %c0_4] : memref<128x4xf32, #tpu.memory_space<vmem>>, vector<128x4xf32>
    %cst_5 = arith.constant dense<0.000000e+00> : vector<32x4xf32>
    %4 = tpu.matmul %2, %3, %cst_5 {dimension_numbers = #tpu.dot_dimension_numbers<[1], [0], [0], [1], [0, 0, 1, 1], [], []>} : vector<32x128xf32>, vector<128x4xf32>, vector<32x4xf32> -> vector<32x4xf32>
    %c0_6 = arith.constant 0 : index
    %c0_7 = arith.constant 0 : index
    %5 = vector.load %arg4[%c0_6, %c0_7] : memref<4x128xf32, #tpu.memory_space<vmem>>, vector<4x128xf32>
    %cst_8 = arith.constant dense<0.000000e+00> : vector<32x128xf32>
    %6 = tpu.matmul %4, %5, %cst_8 {dimension_numbers = #tpu.dot_dimension_numbers<[1], [0], [0], [1], [0, 0, 1, 1], [], []>} : vector<32x4xf32>, vector<4x128xf32>, vector<32x128xf32> -> vector<32x128xf32>
    %7 = arith.subf %2, %6 : vector<32x128xf32>
    %8 = arith.mulf %7, %7 : vector<32x128xf32>
    %c0_9 = arith.constant 0 : index
    %c0_10 = arith.constant 0 : index
    %9 = vector.load %arg3[%c0_9, %c0_10] : memref<128x4xf32, #tpu.memory_space<vmem>>, vector<128x4xf32>
    %cst_11 = arith.constant dense<0.000000e+00> : vector<32x4xf32>
    %10 = tpu.matmul %8, %9, %cst_11 {dimension_numbers = #tpu.dot_dimension_numbers<[1], [0], [0], [1], [0, 0, 1, 1], [], []>} : vector<32x128xf32>, vector<128x4xf32>, vector<32x4xf32> -> vector<32x4xf32>
    %cst_12 = arith.constant 9.99999974E-6 : f32
    %11 = vector.broadcast %cst_12 : f32 to vector<32x4xf32>
    %12 = arith.addf %10, %11 : vector<32x4xf32>
    %13 = math.rsqrt %12 : vector<32x4xf32>
    %c0_13 = arith.constant 0 : index
    %c0_14 = arith.constant 0 : index
    %14 = vector.load %arg5[%c0_13, %c0_14] : memref<4x128xf32, #tpu.memory_space<vmem>>, vector<4x128xf32>
    %cst_15 = arith.constant dense<0.000000e+00> : vector<32x128xf32>
    %15 = tpu.matmul %13, %14, %cst_15 {dimension_numbers = #tpu.dot_dimension_numbers<[1], [0], [0], [1], [0, 0, 1, 1], [], []>} : vector<32x4xf32>, vector<4x128xf32>, vector<32x128xf32> -> vector<32x128xf32>
    %16 = arith.mulf %7, %15 : vector<32x128xf32>
    %c0_16 = arith.constant 0 : index
    %c0_17 = arith.constant 0 : index
    %17 = vector.load %arg6[%c0_16, %c0_17] : memref<1x128xf32, #tpu.memory_space<vmem>>, vector<1x128xf32>
    %18 = vector.broadcast %17 : vector<1x128xf32> to vector<32x128xf32>
    %19 = arith.addf %16, %18 : vector<32x128xf32>
    %20 = vector.shape_cast %19 : vector<32x128xf32> to vector<4x1x8x128xf32>
    %21 = vector.extract_strided_slice %20 {offsets = [0, 0, 0, 0], sizes = [4, 1, 8, 64], strides = [1, 1, 1, 1]} : vector<4x1x8x128xf32> to vector<4x1x8x64xf32>
    %c0_18 = arith.constant 0 : index
    %c0_19 = arith.constant 0 : index
    %c0_20 = arith.constant 0 : index
    %c0_21 = arith.constant 0 : index
    %22 = vector.load %arg7[%c0_18, %c0_19, %c0_20, %c0_21] : memref<4x2x8x64xf32, #tpu.memory_space<vmem>>, vector<4x1x8x64xf32>
    tpu.vector_store %arg7[%c0_18, %c0_19, %c0_20, %c0_21], %21 {strides = array<i32>} : memref<4x2x8x64xf32, #tpu.memory_space<vmem>>, vector<4x1x8x64xf32>,
    %23 = vector.extract_strided_slice %20 {offsets = [0, 0, 0, 64], sizes = [4, 1, 8, 64], strides = [1, 1, 1, 1]} : vector<4x1x8x128xf32> to vector<4x1x8x64xf32>
    %c0_22 = arith.constant 0 : index
    %c1 = arith.constant 1 : index
    %c0_23 = arith.constant 0 : index
    %c0_24 = arith.constant 0 : index
    %24 = vector.load %arg7[%c0_22, %c1, %c0_23, %c0_24] : memref<4x2x8x64xf32, #tpu.memory_space<vmem>>, vector<4x1x8x64xf32>
    tpu.vector_store %arg7[%c0_22, %c1, %c0_23, %c0_24], %23 {strides = array<i32>} : memref<4x2x8x64xf32, #tpu.memory_space<vmem>>, vector<4x1x8x64xf32>,
    return
  }
  func.func @transform_0(%arg0: i32) -> (i32, i32) {
    %c0_i32 = arith.constant 0 : i32
    %c0_i32_0 = arith.constant 0 : i32
    return %arg0, %c0_i32 : i32, i32
  }
  func.func @transform_1(%arg0: i32) -> (i32, i32) {
    %c0_i32 = arith.constant 0 : i32
    %c0_i32_0 = arith.constant 0 : i32
    %c0_i32_1 = arith.constant 0 : i32
    return %c0_i32, %c0_i32_0 : i32, i32
  }
  func.func @transform_2(%arg0: i32) -> (i32, i32) {
    %c0_i32 = arith.constant 0 : i32
    %c0_i32_0 = arith.constant 0 : i32
    %c0_i32_1 = arith.constant 0 : i32
    return %c0_i32, %c0_i32_0 : i32, i32
  }
  func.func @transform_3(%arg0: i32) -> (i32, i32) {
    %c0_i32 = arith.constant 0 : i32
    %c0_i32_0 = arith.constant 0 : i32
    %c0_i32_1 = arith.constant 0 : i32
    return %c0_i32, %c0_i32_0 : i32, i32
  }
  func.func @transform_4(%arg0: i32) -> (i32, i32) {
    %c0_i32 = arith.constant 0 : i32
    %c0_i32_0 = arith.constant 0 : i32
    %c0_i32_1 = arith.constant 0 : i32
    return %c0_i32, %c0_i32_0 : i32, i32
  }
  func.func @transform_5(%arg0: i32) -> (i32, i32) {
    %c0_i32 = arith.constant 0 : i32
    %c0_i32_0 = arith.constant 0 : i32
    %c0_i32_1 = arith.constant 0 : i32
    return %c0_i32, %c0_i32_0 : i32, i32
  }
  func.func @transform_6(%arg0: i32) -> (i32, i32, i32, i32) {
    %c0_i32 = arith.constant 0 : i32
    %c0_i32_0 = arith.constant 0 : i32
    %c0_i32_1 = arith.constant 0 : i32
    %c0_i32_2 = arith.constant 0 : i32
    return %arg0, %c0_i32, %c0_i32_0, %c0_i32_1 : i32, i32, i32, i32
  }
}

</mosaic_0001>

<llo_original>
// kernel: tpu_custom_call.1
$region0: #{tpu_custom_call.1}
  #allocation0 [shape = 'u32[]', space=smem, size = 0x4, offset = 0x4, fixed_abs, tag = 'smem constant byte address 0x4 - core index']
  #allocation1 [shape = 'u32[144,128]{1,0:T(1,128)}', space=vmem, size = 0x12000, scoped, tag = 'internal scratch']
  %s0 = inlined_call_operand.vmem [shape: f32[128,128], index: 0, kind: input, shape index: {}]
  %s1 = inlined_call_operand.hbm [shape: f32[128,128], index: 1, kind: input, shape index: {}]
  %s2 = inlined_call_operand.vmem [shape: f32[128,4], index: 2, kind: input, shape index: {}]
  %s3 = inlined_call_operand.vmem [shape: f32[4,128], index: 3, kind: input, shape index: {}]
  %s4 = inlined_call_operand.vmem [shape: f32[4,128], index: 4, kind: input, shape index: {}]
  %s5 = inlined_call_operand.vmem [shape: f32[1,128], index: 5, kind: input, shape index: {}]
  %s6 = inlined_call_operand.hbm [shape: f32[16,2,8,64], index: 6, kind: output, shape index: {}]
  %s7 = sld [smem:[#allocation0]]
  $region61: #{tpu_custom_call.1} parent=0
    _
  %s9 = ssub.s32 1, %s7
  %s10 = scalar_select 0, %s9, %s7
  $region1: #{tpu_custom_call.1} parent=0
    #allocation2 [shape = 'u8[65536]{0}', space=vmem, size = 0x10000, scoped, tag = 'input window, operand 1, single buffered']
    #allocation3 [shape = 's32[2]{0}', space=sflag, size = 0x8, scoped, tag = 'scoped memory for tpu_custom_call.1']
    #allocation4 [shape = 's32[2]{0}', space=sflag, size = 0x8, scoped, tag = 'scoped memory for tpu_custom_call.1']
    #allocation5 [shape = 'u8[65536]{0}', space=vmem, size = 0x10000, scoped, tag = 'output window, operand 0']
    %11 = vsyncpa [#allocation3], 0
    %12 = vsyncpa [#allocation4], 0
    %s13 = scalar_lea.sflag [#allocation4], 1
    %14 = vsyncpa %s13, 0
    loop: start=0, step=1, limit=6
    $region2: #{tpu_custom_call.1} parent=1 // loop_pre_header
      _
    $region3: #{tpu_custom_call.1} parent=1 // loop_header
      %s16 = sphi 0, %s20
      %p17 = scmp.ge.s32.totalorder %s16, 6
      %s26 = sphi 0, %s28
      %s29 = sphi 0, %s26
      %s30 = sphi 0, %s29
      %s46 = sphi 0, %s30
      %s50 = sphi 0, %s50
      %s52 = sphi 0, %s50
      %s53 = sphi 0, %s52
      %s67 = sphi 0, %s53
      %s71 = sphi 0, %s71
      %s73 = sphi 0, %s71
      %s74 = sphi 0, %s73
      %s88 = sphi 0, %s74
      %s92 = sphi 0, %s92
      %s94 = sphi 0, %s92
      %s95 = sphi 0, %s94
      %s109 = sphi 0, %s95
      %s113 = sphi 0, %s113
      %s115 = sphi 0, %s113
      %s116 = sphi 0, %s115
      %s130 = sphi 0, %s116
      %s134 = sphi 0, %s134
      %s136 = sphi 0, %s134
      %s137 = sphi 0, %s136
      %s151 = sphi 0, %s137
      %s157 = sphi 0, %s159
      %s160 = sphi 0, %s157
      %s161 = sphi 0, %s160
      %s177 = sphi 0, %s161
    $region4: #{tpu_custom_call.1} parent=1 // loop_header_branch
      %19 = sbr.rel (%p17) target = $region8
    $region5: #{tpu_custom_call.1} parent=1 // loop_body
      %s21 = ssub.s32 %s16, 1
      %s22 = ssub.s32 %s16, 2
      %s23 = sadd.s32 %s16, 1
      %s24 = ssub.s32 %s16, %s23
      %p25 = scmp.eq.s32.totalorder %s24, 0
      %s27 = sadd.s32 %s26, 1
      %s28 = scalar_select %p25, %s26, %s27
      %p31 = pneg %p25
      %p32 = scmp.eq.s32.totalorder %s16, 3
      %p33 = por %p31, %p32
      %p34 = scmp.ne.s32.totalorder %s26, %s29
      %p35 = scmp.eq.s32.totalorder %s16, 0
      %p36 = por %p34, %p35
      %p37 = scmp.ne.s32.totalorder %s26, %s29
      %p38 = scmp.eq.s32.totalorder %s21, 3
      %p39 = por %p37, %p38
      %p40 = scmp.ne.s32.totalorder %s29, %s30
      %p41 = scmp.eq.s32.totalorder %s21, 0
      %p42 = por %p40, %p41
      %p43 = scmp.ne.s32.totalorder %s29, %s30
      %p44 = scmp.eq.s32.totalorder %s22, 3
      %p45 = por %p43, %p44
      %p47 = scmp.ne.s32.totalorder %s30, %s46
      %p48 = scmp.eq.s32.totalorder %s22, 0
      %p49 = por %p47, %p48
      %s51 = sadd.s32 %s50, 1
      %p54 = scmp.eq.s32.totalorder %s16, 3
      %p55 = scmp.ne.s32.totalorder %s50, %s52
      %p56 = scmp.eq.s32.totalorder %s16, 0
      %p57 = por %p55, %p56
      %p58 = scmp.ne.s32.totalorder %s50, %s52
      %p59 = scmp.eq.s32.totalorder %s21, 3
      %p60 = por %p58, %p59
      %p61 = scmp.ne.s32.totalorder %s52, %s53
      %p62 = scmp.eq.s32.totalorder %s21, 0
      %p63 = por %p61, %p62
      %p64 = scmp.ne.s32.totalorder %s52, %s53
      %p65 = scmp.eq.s32.totalorder %s22, 3
      %p66 = por %p64, %p65
      %p68 = scmp.ne.s32.totalorder %s53, %s67
      %p69 = scmp.eq.s32.totalorder %s22, 0
      %p70 = por %p68, %p69
      %s72 = sadd.s32 %s71, 1
      %p75 = scmp.eq.s32.totalorder %s16, 3
      %p76 = scmp.ne.s32.totalorder %s71, %s73
      %p77 = scmp.eq.s32.totalorder %s16, 0
      %p78 = por %p76, %p77
      %p79 = scmp.ne.s32.totalorder %s71, %s73
      %p80 = scmp.eq.s32.totalorder %s21, 3
      %p81 = por %p79, %p80
      %p82 = scmp.ne.s32.totalorder %s73, %s74
      %p83 = scmp.eq.s32.totalorder %s21, 0
      %p84 = por %p82, %p83
      %p85 = scmp.ne.s32.totalorder %s73, %s74
      %p86 = scmp.eq.s32.totalorder %s22, 3
      %p87 = por %p85, %p86
      %p89 = scmp.ne.s32.totalorder %s74, %s88
      %p90 = scmp.eq.s32.totalorder %s22, 0
      %p91 = por %p89, %p90
      %s93 = sadd.s32 %s92, 1
      %p96 = scmp.eq.s32.totalorder %s16, 3
      %p97 = scmp.ne.s32.totalorder %s92, %s94
      %p98 = scmp.eq.s32.totalorder %s16, 0
      %p99 = por %p97, %p98
      %p100 = scmp.ne.s32.totalorder %s92, %s94
      %p101 = scmp.eq.s32.totalorder %s21, 3
      %p102 = por %p100, %p101
      %p103 = scmp.ne.s32.totalorder %s94, %s95
      %p104 = scmp.eq.s32.totalorder %s21, 0
      %p105 = por %p103, %p104
      %p106 = scmp.ne.s32.totalorder %s94, %s95
      %p107 = scmp.eq.s32.totalorder %s22, 3
      %p108 = por %p106, %p107
      %p110 = scmp.ne.s32.totalorder %s95, %s109
      %p111 = scmp.eq.s32.totalorder %s22, 0
      %p112 = por %p110, %p111
      %s114 = sadd.s32 %s113, 1
      %p117 = scmp.eq.s32.totalorder %s16, 3
      %p118 = scmp.ne.s32.totalorder %s113, %s115
      %p119 = scmp.eq.s32.totalorder %s16, 0
      %p120 = por %p118, %p119
      %p121 = scmp.ne.s32.totalorder %s113, %s115
      %p122 = scmp.eq.s32.totalorder %s21, 3
      %p123 = por %p121, %p122
      %p124 = scmp.ne.s32.totalorder %s115, %s116
      %p125 = scmp.eq.s32.totalorder %s21, 0
      %p126 = por %p124, %p125
      %p127 = scmp.ne.s32.totalorder %s115, %s116
      %p128 = scmp.eq.s32.totalorder %s22, 3
      %p129 = por %p127, %p128
      %p131 = scmp.ne.s32.totalorder %s116, %s130
      %p132 = scmp.eq.s32.totalorder %s22, 0
      %p133 = por %p131, %p132
      %s135 = sadd.s32 %s134, 1
      %p138 = scmp.eq.s32.totalorder %s16, 3
      %p139 = scmp.ne.s32.totalorder %s134, %s136
      %p140 = scmp.eq.s32.totalorder %s16, 0
      %p141 = por %p139, %p140
      %p142 = scmp.ne.s32.totalorder %s134, %s136
      %p143 = scmp.eq.s32.totalorder %s21, 3
      %p144 = por %p142, %p143
      %p145 = scmp.ne.s32.totalorder %s136, %s137
      %p146 = scmp.eq.s32.totalorder %s21, 0
      %p147 = por %p145, %p146
      %p148 = scmp.ne.s32.totalorder %s136, %s137
      %p149 = scmp.eq.s32.totalorder %s22, 3
      %p150 = por %p148, %p149
      %p152 = scmp.ne.s32.totalorder %s137, %s151
      %p153 = scmp.eq.s32.totalorder %s22, 0
      %p154 = por %p152, %p153
      %s155 = ssub.s32 %s16, %s23
      %p156 = scmp.eq.s32.totalorder %s155, 0
      %s158 = sadd.s32 %s157, 1
      %s159 = scalar_select %p156, %s157, %s158
      %p162 = pneg %p156
      %p163 = scmp.eq.s32.totalorder %s16, 3
      %p164 = por %p162, %p163
      %p165 = scmp.ne.s32.totalorder %s157, %s160
      %p166 = scmp.eq.s32.totalorder %s16, 0
      %p167 = por %p165, %p166
      %p168 = scmp.ne.s32.totalorder %s157, %s160
      %p169 = scmp.eq.s32.totalorder %s21, 3
      %p170 = por %p168, %p169
      %p171 = scmp.ne.s32.totalorder %s160, %s161
      %p172 = scmp.eq.s32.totalorder %s21, 0
      %p173 = por %p171, %p172
      %p174 = scmp.ne.s32.totalorder %s160, %s161
      %p175 = scmp.eq.s32.totalorder %s22, 3
      %p176 = por %p174, %p175
      %p178 = scmp.ne.s32.totalorder %s161, %s177
      %p179 = scmp.eq.s32.totalorder %s22, 0
      %p180 = por %p178, %p179
      %p181 = scmp.le.s32.totalorder 1, %s16
      %p182 = scmp.lt.s32.totalorder %s16, 5
      %p183 = pnand %p181, %p182
      %p184 = pneg %p183
      // Predicated region
      $region9: #{tpu_custom_call.1} parent=5 // pred_check
        _
      $region10: #{tpu_custom_call.1} parent=5 // pred_check_branch
        %186 = sbr.rel (%p183) target = $region12
      $region11: #{tpu_custom_call.1} parent=5 // pred_region
        %s187 = ssub.s32 %s16, 1
        // Predicated region
        $region13: #{tpu_custom_call.1} parent=11 // pred_check
          %p188 = pneg %p63
        $region14: #{tpu_custom_call.1} parent=11 // pred_check_branch
          %190 = sbr.rel (%p188) target = $region16
        $region15: #{tpu_custom_call.1} parent=11 // pred_region
          %s192 = ssub.s32 2048, 2048
          %193 = vsyncadd [#allocation3], %s192
          %s194 = sshll.u32 [#allocation2], 4
          %s195 = int_to_ptr.vmem [resolvable:$true] %s194
          %200 = dma.hbm_to_vmem [thread:$0]  %s1, 2048, %s195, [#allocation3], 128, 128, 8
        $region16: #{tpu_custom_call.1} parent=11 // pred_fallthru
          _
        // Predicated region
        $region17: #{tpu_custom_call.1} parent=11 // pred_check
          %p201 = pneg %p84
        $region18: #{tpu_custom_call.1} parent=11 // pred_check_branch
          %203 = sbr.rel (%p201) target = $region20
        $region19: #{tpu_custom_call.1} parent=11 // pred_region
          _
        $region20: #{tpu_custom_call.1} parent=11 // pred_fallthru
          _
        // Predicated region
        $region21: #{tpu_custom_call.1} parent=11 // pred_check
          %p204 = pneg %p105
        $region22: #{tpu_custom_call.1} parent=11 // pred_check_branch
          %206 = sbr.rel (%p204) target = $region24
        $region23: #{tpu_custom_call.1} parent=11 // pred_region
          _
        $region24: #{tpu_custom_call.1} parent=11 // pred_fallthru
          _
        // Predicated region
        $region25: #{tpu_custom_call.1} parent=11 // pred_check
          %p207 = pneg %p126
        $region26: #{tpu_custom_call.1} parent=11 // pred_check_branch
          %209 = sbr.rel (%p207) target = $region28
        $region27: #{tpu_custom_call.1} parent=11 // pred_region
          _
        $region28: #{tpu_custom_call.1} parent=11 // pred_fallthru
          _
        // Predicated region
        $region29: #{tpu_custom_call.1} parent=11 // pred_check
          %p210 = pneg %p147
        $region30: #{tpu_custom_call.1} parent=11 // pred_check_branch
          %212 = sbr.rel (%p210) target = $region32
        $region31: #{tpu_custom_call.1} parent=11 // pred_region
          _
        $region32: #{tpu_custom_call.1} parent=11 // pred_fallthru
          _
      $region12: #{tpu_custom_call.1} parent=5 // pred_fallthru
        _
      %p213 = scmp.lt.s32.totalorder %s16, 4
      // Predicated region
      $region33: #{tpu_custom_call.1} parent=5 // pred_check
        %p214 = pneg %p213
      $region34: #{tpu_custom_call.1} parent=5 // pred_check_branch
        %216 = sbr.rel (%p214) target = $region36
      $region35: #{tpu_custom_call.1} parent=5 // pred_region
        // Predicated region
        $region37: #{tpu_custom_call.1} parent=35 // pred_check
          %p217 = pneg %p36
        $region38: #{tpu_custom_call.1} parent=35 // pred_check_branch
          %219 = sbr.rel (%p217) target = $region40
        $region39: #{tpu_custom_call.1} parent=35 // pred_region
          %s220 = smul.u32 4, %s16
          %p221 = scmp.lt.s32.totalorder %s220, 15
          %s222 = scalar_select %p221, %s220, 15
          %s223 = smul.addr %s222, 8
          %s224 = scalar_lea.vmem %s0, %s223
          %s225 = smul.u32 4, %s16
        $region40: #{tpu_custom_call.1} parent=35 // pred_fallthru
          _
      $region36: #{tpu_custom_call.1} parent=5 // pred_fallthru
        _
      %p226 = scmp.le.s32.totalorder 1, %s16
      %p227 = scmp.lt.s32.totalorder %s16, 5
      %p228 = pnand %p226, %p227
      %p229 = pneg %p228
      // Predicated region
      $region41: #{tpu_custom_call.1} parent=5 // pred_check
        _
      $region42: #{tpu_custom_call.1} parent=5 // pred_check_branch
        %231 = sbr.rel (%p228) target = $region44
      $region43: #{tpu_custom_call.1} parent=5 // pred_region
        %s232 = ssub.s32 %s16, 1
        // Predicated region
        $region45: #{tpu_custom_call.1} parent=43 // pred_check
          %p233 = pneg %p63
        $region46: #{tpu_custom_call.1} parent=43 // pred_check_branch
          %235 = sbr.rel (%p233) target = $region48
        $region47: #{tpu_custom_call.1} parent=43 // pred_region
          %236 = dma.done [#allocation3], 2048
        $region48: #{tpu_custom_call.1} parent=43 // pred_fallthru
          _
        %s237 = smul.u32 4, %s21
        %p238 = scmp.lt.s32.totalorder %s237, 15
        %s239 = scalar_select %p238, %s237, 15
        %s240 = smul.addr %s239, 8
        %s241 = scalar_lea.vmem %s0, %s240
        %p242 = pneg %p42
        %p243 = pneg %p39
        %p244 = pneg %p63
        %p245 = pneg %p60
        %p246 = pneg %p84
        %p247 = pneg %p81
        %p248 = pneg %p105
        %p249 = pneg %p102
        %p250 = pneg %p126
        %p251 = pneg %p123
        %p252 = pneg %p147
        %p253 = pneg %p144
        %p254 = pneg %p173
        %p255 = pneg %p170
        %s256 = sand.u32 %s160, 1
        %s257 = scalar_lea.sflag [#allocation4], %s256
        %s258 = sand.u32 %s160, 1
        %s259 = smul.addr %s258, 64
        %s260 = scalar_lea.vmem [#allocation5], %s259
        %s261 = smul.u32 4, %s21
        %p262 = scmp.lt.s32.totalorder %s261, 15
        %s263 = scalar_select %p262, %s261, 15
        %s264 = smul.addr %s263, 8
        %s265 = scalar_lea.vmem %s0, %s264
        %s266 = smul.u32 4, %s21
        %s267 = smul.u32 4, %s21
        %v268 = vld [vmem:[%s265] sm:$0xff]
        %v269 = vld [vmem:[%s265 + $0x8] sm:$0xff]
        %v270 = vld [vmem:[%s265 + $0x10] sm:$0xff]
        %v271 = vld [vmem:[%s265 + $0x18] sm:$0xff]
        %v272 = vld [vmem:[#allocation2] sm:$0xff]
        %v273 = vld [vmem:[#allocation2 + $0x8] sm:$0xff]
        %v274 = vld [vmem:[#allocation2 + $0x10] sm:$0xff]
        %v275 = vld [vmem:[#allocation2 + $0x18] sm:$0xff]
        %v276 = vld [vmem:[#allocation2 + $0x20] sm:$0xff]
        %v277 = vld [vmem:[#allocation2 + $0x28] sm:$0xff]
        %v278 = vld [vmem:[#allocation2 + $0x30] sm:$0xff]
        %v279 = vld [vmem:[#allocation2 + $0x38] sm:$0xff]
        %v280 = vld [vmem:[#allocation2 + $0x40] sm:$0xff]
        %v281 = vld [vmem:[#allocation2 + $0x48] sm:$0xff]
        %v282 = vld [vmem:[#allocation2 + $0x50] sm:$0xff]
        %v283 = vld [vmem:[#allocation2 + $0x58] sm:$0xff]
        %v284 = vld [vmem:[#allocation2 + $0x60] sm:$0xff]
        %v285 = vld [vmem:[#allocation2 + $0x68] sm:$0xff]
        %v286 = vld [vmem:[#allocation2 + $0x70] sm:$0xff]
        %v287 = vld [vmem:[#allocation2 + $0x78] sm:$0xff]
        %288 = vmatprep.subr.mxu0 0.0
        %289 = vmatpush1.msra.mxu0 %v272
        %290 = vmatprep.subr.mxu0 0.0
        %291 = vmatpush1.msra.mxu0 %v273
        %292 = vmatprep.subr.mxu0 0.0
        %293 = vmatpush1.msra.mxu0 %v274
        %294 = vmatprep.subr.mxu0 0.0
        %295 = vmatpush1.msra.mxu0 %v275
        %296 = vmatprep.subr.mxu0 0.0
        %297 = vmatpush1.msra.mxu0 %v276
        %298 = vmatprep.subr.mxu0 0.0
        %299 = vmatpush1.msra.mxu0 %v277
        %300 = vmatprep.subr.mxu0 0.0
        %301 = vmatpush1.msra.mxu0 %v278
        %302 = vmatprep.subr.mxu0 0.0
        %303 = vmatpush1.msra.mxu0 %v279
        %304 = vmatprep.subr.mxu0 0.0
        %305 = vmatpush1.msra.mxu0 %v280
        %306 = vmatprep.subr.mxu0 0.0
        %307 = vmatpush1.msra.mxu0 %v281
        %308 = vmatprep.subr.mxu0 0.0
        %309 = vmatpush1.msra.mxu0 %v282
        %310 = vmatprep.subr.mxu0 0.0
        %311 = vmatpush1.msra.mxu0 %v283
        %312 = vmatprep.subr.mxu0 0.0
        %313 = vmatpush1.msra.mxu0 %v284
        %314 = vmatprep.subr.mxu0 0.0
        %315 = vmatpush1.msra.mxu0 %v285
        %316 = vmatprep.subr.mxu0 0.0
        %317 = vmatpush1.msra.mxu0 %v286
        %318 = vmatprep.subr.mxu0 0.0
        %319 = vmatpush1.msra.mxu0 %v287
        %320 = vmatprep.subr.mxu0 0.0
        %321 = vmatpush1.msra.mxu0 0.0
        %322 = vmatprep.subr.mxu0 0.0
        %323 = vmatpush1.msra.mxu0 0.0
        %324 = vmatprep.subr.mxu0 0.0
        %325 = vmatpush1.msra.mxu0 0.0
        %326 = vmatprep.subr.mxu0 0.0
        %327 = vmatpush1.msra.mxu0 0.0
        %328 = vmatprep.subr.mxu0 0.0
        %329 = vmatpush1.msra.mxu0 0.0
        %330 = vmatprep.subr.mxu0 0.0
        %331 = vmatpush1.msra.mxu0 0.0
        %332 = vmatprep.subr.mxu0 0.0
        %333 = vmatpush1.msra.mxu0 0.0
        %334 = vmatprep.subr.mxu0 0.0
        %335 = vmatpush1.msra.mxu0 0.0
        %336 = vmatprep.subr.mxu0 0.0
        %337 = vmatpush1.msra.mxu0 0.0
        %338 = vmatprep.subr.mxu0 0.0
        %339 = vmatpush1.msra.mxu0 0.0
        %340 = vmatprep.subr.mxu0 0.0
        %341 = vmatpush1.msra.mxu0 0.0
        %342 = vmatprep.subr.mxu0 0.0
        %343 = vmatpush1.msra.mxu0 0.0
        %344 = vmatprep.subr.mxu0 0.0
        %345 = vmatpush1.msra.mxu0 0.0
        %346 = vmatprep.subr.mxu0 0.0
        %347 = vmatpush1.msra.mxu0 0.0
        %348 = vmatprep.subr.mxu0 0.0
        %349 = vmatpush1.msra.mxu0 0.0
        %350 = vmatprep.subr.mxu0 0.0
        %351 = vmatpush1.msra.mxu0 0.0
        %352 = vmatprep.mubr.f32.mxu0 0.0
        %353 = vmatmul.mubr.f32.gmra.mrb[0].mxu0 %v268
        %v354 = vpop.f32.mrb[0].mxu0
        %v355 = vadd.f32 0.0, %v354
        %v356 = vpop.f32.mrb[0].mxu0
        %357 = vmatprep.mubr.f32.mxu0 0.0
        %358 = vmatmul.mubr.f32.gmra.mrb[0].mxu0 %v269
        %v359 = vpop.f32.mrb[0].mxu0
        %v360 = vadd.f32 0.0, %v359
        %v361 = vpop.f32.mrb[0].mxu0
        %362 = vmatprep.mubr.f32.mxu0 0.0
        %363 = vmatmul.mubr.f32.gmra.mrb[0].mxu0 %v270
        %v364 = vpop.f32.mrb[0].mxu0
        %v365 = vadd.f32 0.0, %v364
        %v366 = vpop.f32.mrb[0].mxu0
        %367 = vmatprep.mubr.f32.mxu0 0.0
        %368 = vmatmul.mubr.f32.gmra.mrb[0].mxu0 %v271
        %v369 = vpop.f32.mrb[0].mxu0
        %v370 = vadd.f32 0.0, %v369
        %v371 = vpop.f32.mrb[0].mxu0
        %372 = vdwg.mxu0
        %v373 = vld [vmem:[%s2] sm:$0xff]
        %v374 = vld [vmem:[%s2 + $0x8] sm:$0xff]
        %v375 = vld [vmem:[%s2 + $0x10] sm:$0xff]
        %v376 = vld [vmem:[%s2 + $0x18] sm:$0xff]
        %v377 = vld [vmem:[%s2 + $0x20] sm:$0xff]
        %v378 = vld [vmem:[%s2 + $0x28] sm:$0xff]
        %v379 = vld [vmem:[%s2 + $0x30] sm:$0xff]
        %v380 = vld [vmem:[%s2 + $0x38] sm:$0xff]
        %v381 = vld [vmem:[%s2 + $0x40] sm:$0xff]
        %v382 = vld [vmem:[%s2 + $0x48] sm:$0xff]
        %v383 = vld [vmem:[%s2 + $0x50] sm:$0xff]
        %v384 = vld [vmem:[%s2 + $0x58] sm:$0xff]
        %v385 = vld [vmem:[%s2 + $0x60] sm:$0xff]
        %v386 = vld [vmem:[%s2 + $0x68] sm:$0xff]
        %v387 = vld [vmem:[%s2 + $0x70] sm:$0xff]
        %v388 = vld [vmem:[%s2 + $0x78] sm:$0xff]
        %389 = vmatprep.subr.mxu0 0.0
        %390 = vmatpush1.msra.mxu0 %v373
        %391 = vmatprep.subr.mxu0 0.0
        %392 = vmatpush1.msra.mxu0 %v374
        %393 = vmatprep.subr.mxu0 0.0
        %394 = vmatpush1.msra.mxu0 %v375
        %395 = vmatprep.subr.mxu0 0.0
        %396 = vmatpush1.msra.mxu0 %v376
        %397 = vmatprep.subr.mxu0 0.0
        %398 = vmatpush1.msra.mxu0 %v377
        %399 = vmatprep.subr.mxu0 0.0
        %400 = vmatpush1.msra.mxu0 %v378
        %401 = vmatprep.subr.mxu0 0.0
        %402 = vmatpush1.msra.mxu0 %v379
        %403 = vmatprep.subr.mxu0 0.0
        %404 = vmatpush1.msra.mxu0 %v380
        %405 = vmatprep.subr.mxu0 0.0
        %406 = vmatpush1.msra.mxu0 %v381
        %407 = vmatprep.subr.mxu0 0.0
        %408 = vmatpush1.msra.mxu0 %v382
        %409 = vmatprep.subr.mxu0 0.0
        %410 = vmatpush1.msra.mxu0 %v383
        %411 = vmatprep.subr.mxu0 0.0
        %412 = vmatpush1.msra.mxu0 %v384
        %413 = vmatprep.subr.mxu0 0.0
        %414 = vmatpush1.msra.mxu0 %v385
        %415 = vmatprep.subr.mxu0 0.0
        %416 = vmatpush1.msra.mxu0 %v386
        %417 = vmatprep.subr.mxu0 0.0
        %418 = vmatpush1.msra.mxu0 %v387
        %419 = vmatprep.subr.mxu0 0.0
        %420 = vmatpush1.msra.mxu0 %v388
        %421 = vmatprep.subr.mxu0 0.0
        %422 = vmatpush1.msra.mxu0 0.0
        %423 = vmatprep.subr.mxu0 0.0
        %424 = vmatpush1.msra.mxu0 0.0
        %425 = vmatprep.subr.mxu0 0.0
        %426 = vmatpush1.msra.mxu0 0.0
        %427 = vmatprep.subr.mxu0 0.0
        %428 = vmatpush1.msra.mxu0 0.0
        %429 = vmatprep.subr.mxu0 0.0
        %430 = vmatpush1.msra.mxu0 0.0
        %431 = vmatprep.subr.mxu0 0.0
        %432 = vmatpush1.msra.mxu0 0.0
        %433 = vmatprep.subr.mxu0 0.0
        %434 = vmatpush1.msra.mxu0 0.0
        %435 = vmatprep.subr.mxu0 0.0
        %436 = vmatpush1.msra.mxu0 0.0
        %437 = vmatprep.subr.mxu0 0.0
        %438 = vmatpush1.msra.mxu0 0.0
        %439 = vmatprep.subr.mxu0 0.0
        %440 = vmatpush1.msra.mxu0 0.0
        %441 = vmatprep.subr.mxu0 0.0
        %442 = vmatpush1.msra.mxu0 0.0
        %443 = vmatprep.subr.mxu0 0.0
        %444 = vmatpush1.msra.mxu0 0.0
        %445 = vmatprep.subr.mxu0 0.0
        %446 = vmatpush1.msra.mxu0 0.0
        %447 = vmatprep.subr.mxu0 0.0
        %448 = vmatpush1.msra.mxu0 0.0
        %449 = vmatprep.subr.mxu0 0.0
        %450 = vmatpush1.msra.mxu0 0.0
        %451 = vmatprep.subr.mxu0 0.0
        %452 = vmatpush1.msra.mxu0 0.0
        %453 = vmatprep.mubr.f32.mxu0 0.0
        %454 = vmatmul.mubr.f32.gmra.mrb[0].mxu0 %v355
        %v455 = vpop.f32.mrb[0].mxu0
        %v456 = vadd.f32 0.0, %v455
        %v457 = vpop.f32.mrb[0].mxu0
        %458 = vmatprep.mubr.f32.mxu0 0.0
        %459 = vmatmul.mubr.f32.gmra.mrb[0].mxu0 %v360
        %v460 = vpop.f32.mrb[0].mxu0
        %v461 = vadd.f32 0.0, %v460
        %v462 = vpop.f32.mrb[0].mxu0
        %463 = vmatprep.mubr.f32.mxu0 0.0
        %464 = vmatmul.mubr.f32.gmra.mrb[0].mxu0 %v365
        %v465 = vpop.f32.mrb[0].mxu0
        %v466 = vadd.f32 0.0, %v465
        %v467 = vpop.f32.mrb[0].mxu0
        %468 = vmatprep.mubr.f32.mxu0 0.0
        %469 = vmatmul.mubr.f32.gmra.mrb[0].mxu0 %v370
        %v470 = vpop.f32.mrb[0].mxu0
        %v471 = vadd.f32 0.0, %v470
        %v472 = vpop.f32.mrb[0].mxu0
        %473 = vdwg.mxu0
        %v474 = vld [vmem:[%s3] sm:$0xf]
        %vm475 = vcmask 31744
        %v477 = vsel %vm475, %v456, 0
        %v480 = vsel %vm475, %v461, 0
        %v483 = vsel %vm475, %v466, 0
        %v486 = vsel %vm475, %v471, 0
        %vm488 = vcmask 1043456
        %v490 = vsel %vm488, %v474, 0
        %492 = vmatprep.subr.mxu0 0.0
        %493 = vmatpush1.msra.mxu0 %v490
        %494 = vmatprep.subr.mxu0 0.0
        %495 = vmatpush1.msra.mxu0 0.0
        %496 = vmatprep.subr.mxu0 0.0
        %497 = vmatpush1.msra.mxu0 0.0
        %498 = vmatprep.subr.mxu0 0.0
        %499 = vmatpush1.msra.mxu0 0.0
        %500 = vmatprep.subr.mxu0 0.0
        %501 = vmatpush1.msra.mxu0 0.0
        %502 = vmatprep.subr.mxu0 0.0
        %503 = vmatpush1.msra.mxu0 0.0
        %504 = vmatprep.subr.mxu0 0.0
        %505 = vmatpush1.msra.mxu0 0.0
        %506 = vmatprep.subr.mxu0 0.0
        %507 = vmatpush1.msra.mxu0 0.0
        %508 = vmatprep.subr.mxu0 0.0
        %509 = vmatpush1.msra.mxu0 0.0
        %510 = vmatprep.subr.mxu0 0.0
        %511 = vmatpush1.msra.mxu0 0.0
        %512 = vmatprep.subr.mxu0 0.0
        %513 = vmatpush1.msra.mxu0 0.0
        %514 = vmatprep.subr.mxu0 0.0
        %515 = vmatpush1.msra.mxu0 0.0
        %516 = vmatprep.subr.mxu0 0.0
        %517 = vmatpush1.msra.mxu0 0.0
        %518 = vmatprep.subr.mxu0 0.0
        %519 = vmatpush1.msra.mxu0 0.0
        %520 = vmatprep.subr.mxu0 0.0
        %521 = vmatpush1.msra.mxu0 0.0
        %522 = vmatprep.subr.mxu0 0.0
        %523 = vmatpush1.msra.mxu0 0.0
        %524 = vmatprep.subr.mxu0 0.0
        %525 = vmatpush1.msra.mxu0 0.0
        %526 = vmatprep.subr.mxu0 0.0
        %527 = vmatpush1.msra.mxu0 0.0
        %528 = vmatprep.subr.mxu0 0.0
        %529 = vmatpush1.msra.mxu0 0.0
        %530 = vmatprep.subr.mxu0 0.0
        %531 = vmatpush1.msra.mxu0 0.0
        %532 = vmatprep.subr.mxu0 0.0
        %533 = vmatpush1.msra.mxu0 0.0
        %534 = vmatprep.subr.mxu0 0.0
        %535 = vmatpush1.msra.mxu0 0.0
        %536 = vmatprep.subr.mxu0 0.0
        %537 = vmatpush1.msra.mxu0 0.0
        %538 = vmatprep.subr.mxu0 0.0
        %539 = vmatpush1.msra.mxu0 0.0
        %540 = vmatprep.subr.mxu0 0.0
        %541 = vmatpush1.msra.mxu0 0.0
        %542 = vmatprep.subr.mxu0 0.0
        %543 = vmatpush1.msra.mxu0 0.0
        %544 = vmatprep.subr.mxu0 0.0
        %545 = vmatpush1.msra.mxu0 0.0
        %546 = vmatprep.subr.mxu0 0.0
        %547 = vmatpush1.msra.mxu0 0.0
        %548 = vmatprep.subr.mxu0 0.0
        %549 = vmatpush1.msra.mxu0 0.0
        %550 = vmatprep.subr.mxu0 0.0
        %551 = vmatpush1.msra.mxu0 0.0
        %552 = vmatprep.subr.mxu0 0.0
        %553 = vmatpush1.msra.mxu0 0.0
        %554 = vmatprep.subr.mxu0 0.0
        %555 = vmatpush1.msra.mxu0 0.0
        %556 = vmatprep.mubr.f32.mxu0 0.0
        %557 = vmatmul.mubr.f32.gmra.mrb[0].mxu0 %v477
        %v558 = vpop.f32.mrb[0].mxu0
        %v559 = vadd.f32 0.0, %v558
        %v560 = vpop.f32.mrb[0].mxu0
        %561 = vmatprep.mubr.f32.mxu0 0.0
        %562 = vmatmul.mubr.f32.gmra.mrb[0].mxu0 %v480
        %v563 = vpop.f32.mrb[0].mxu0
        %v564 = vadd.f32 0.0, %v563
        %v565 = vpop.f32.mrb[0].mxu0
        %566 = vmatprep.mubr.f32.mxu0 0.0
        %567 = vmatmul.mubr.f32.gmra.mrb[0].mxu0 %v483
        %v568 = vpop.f32.mrb[0].mxu0
        %v569 = vadd.f32 0.0, %v568
        %v570 = vpop.f32.mrb[0].mxu0
        %571 = vmatprep.mubr.f32.mxu0 0.0
        %572 = vmatmul.mubr.f32.gmra.mrb[0].mxu0 %v486
        %v573 = vpop.f32.mrb[0].mxu0
        %v574 = vadd.f32 0.0, %v573
        %v575 = vpop.f32.mrb[0].mxu0
        %576 = vdwg.mxu0
        %v577 = vsub.f32 %v355, %v559
        %v578 = vsub.f32 %v360, %v564
        %v579 = vsub.f32 %v365, %v569
        %v580 = vsub.f32 %v370, %v574
        %v581 = vmul.f32 %v577, %v577
        %v582 = vmul.f32 %v578, %v578
        %v583 = vmul.f32 %v579, %v579
        %v584 = vmul.f32 %v580, %v580
        %585 = vmatprep.subr.mxu0 0.0
        %586 = vmatpush1.msra.mxu0 %v373
        %587 = vmatprep.subr.mxu0 0.0
        %588 = vmatpush1.msra.mxu0 %v374
        %589 = vmatprep.subr.mxu0 0.0
        %590 = vmatpush1.msra.mxu0 %v375
        %591 = vmatprep.subr.mxu0 0.0
        %592 = vmatpush1.msra.mxu0 %v376
        %593 = vmatprep.subr.mxu0 0.0
        %594 = vmatpush1.msra.mxu0 %v377
        %595 = vmatprep.subr.mxu0 0.0
        %596 = vmatpush1.msra.mxu0 %v378
        %597 = vmatprep.subr.mxu0 0.0
        %598 = vmatpush1.msra.mxu0 %v379
        %599 = vmatprep.subr.mxu0 0.0
        %600 = vmatpush1.msra.mxu0 %v380
        %601 = vmatprep.subr.mxu0 0.0
        %602 = vmatpush1.msra.mxu0 %v381
        %603 = vmatprep.subr.mxu0 0.0
        %604 = vmatpush1.msra.mxu0 %v382
        %605 = vmatprep.subr.mxu0 0.0
        %606 = vmatpush1.msra.mxu0 %v383
        %607 = vmatprep.subr.mxu0 0.0
        %608 = vmatpush1.msra.mxu0 %v384
        %609 = vmatprep.subr.mxu0 0.0
        %610 = vmatpush1.msra.mxu0 %v385
        %611 = vmatprep.subr.mxu0 0.0
        %612 = vmatpush1.msra.mxu0 %v386
        %613 = vmatprep.subr.mxu0 0.0
        %614 = vmatpush1.msra.mxu0 %v387
        %615 = vmatprep.subr.mxu0 0.0
        %616 = vmatpush1.msra.mxu0 %v388
        %617 = vmatprep.subr.mxu0 0.0
        %618 = vmatpush1.msra.mxu0 0.0
        %619 = vmatprep.subr.mxu0 0.0
        %620 = vmatpush1.msra.mxu0 0.0
        %621 = vmatprep.subr.mxu0 0.0
        %622 = vmatpush1.msra.mxu0 0.0
        %623 = vmatprep.subr.mxu0 0.0
        %624 = vmatpush1.msra.mxu0 0.0
        %625 = vmatprep.subr.mxu0 0.0
        %626 = vmatpush1.msra.mxu0 0.0
        %627 = vmatprep.subr.mxu0 0.0
        %628 = vmatpush1.msra.mxu0 0.0
        %629 = vmatprep.subr.mxu0 0.0
        %630 = vmatpush1.msra.mxu0 0.0
        %631 = vmatprep.subr.mxu0 0.0
        %632 = vmatpush1.msra.mxu0 0.0
        %633 = vmatprep.subr.mxu0 0.0
        %634 = vmatpush1.msra.mxu0 0.0
        %635 = vmatprep.subr.mxu0 0.0
        %636 = vmatpush1.msra.mxu0 0.0
        %637 = vmatprep.subr.mxu0 0.0
        %638 = vmatpush1.msra.mxu0 0.0
        %639 = vmatprep.subr.mxu0 0.0
        %640 = vmatpush1.msra.mxu0 0.0
        %641 = vmatprep.subr.mxu0 0.0
        %642 = vmatpush1.msra.mxu0 0.0
        %643 = vmatprep.subr.mxu0 0.0
        %644 = vmatpush1.msra.mxu0 0.0
        %645 = vmatprep.subr.mxu0 0.0
        %646 = vmatpush1.msra.mxu0 0.0
        %647 = vmatprep.subr.mxu0 0.0
        %648 = vmatpush1.msra.mxu0 0.0
        %649 = vmatprep.mubr.f32.mxu0 0.0
        %650 = vmatmul.mubr.f32.gmra.mrb[0].mxu0 %v581
        %v651 = vpop.f32.mrb[0].mxu0
        %v652 = vadd.f32 1e-05, %v651
        %v653 = vpop.f32.mrb[0].mxu0
        %654 = vmatprep.mubr.f32.mxu0 0.0
        %655 = vmatmul.mubr.f32.gmra.mrb[0].mxu0 %v582
        %v656 = vpop.f32.mrb[0].mxu0
        %v657 = vadd.f32 1e-05, %v656
        %v658 = vpop.f32.mrb[0].mxu0
        %659 = vmatprep.mubr.f32.mxu0 0.0
        %660 = vmatmul.mubr.f32.gmra.mrb[0].mxu0 %v583
        %v661 = vpop.f32.mrb[0].mxu0
        %v662 = vadd.f32 1e-05, %v661
        %v663 = vpop.f32.mrb[0].mxu0
        %664 = vmatprep.mubr.f32.mxu0 0.0
        %665 = vmatmul.mubr.f32.gmra.mrb[0].mxu0 %v584
        %v666 = vpop.f32.mrb[0].mxu0
        %v667 = vadd.f32 1e-05, %v666
        %v668 = vpop.f32.mrb[0].mxu0
        %669 = vdwg.mxu0
        %v670 = vrsqrt.pop %v652
        %v671 = vrsqrt.pop %v657
        %v672 = vrsqrt.pop %v662
        %v673 = vrsqrt.pop %v667
        %v674 = vld [vmem:[%s4] sm:$0xf]
        %v676 = vsel %vm475, %v670, 0
        %v679 = vsel %vm475, %v671, 0
        %v682 = vsel %vm475, %v672, 0
        %v685 = vsel %vm475, %v673, 0
        %v688 = vsel %vm488, %v674, 0
        %690 = vmatprep.subr.mxu0 0.0
        %691 = vmatpush1.msra.mxu0 %v688
        %692 = vmatprep.subr.mxu0 0.0
        %693 = vmatpush1.msra.mxu0 0.0
        %694 = vmatprep.subr.mxu0 0.0
        %695 = vmatpush1.msra.mxu0 0.0
        %696 = vmatprep.subr.mxu0 0.0
        %697 = vmatpush1.msra.mxu0 0.0
        %698 = vmatprep.subr.mxu0 0.0
        %699 = vmatpush1.msra.mxu0 0.0
        %700 = vmatprep.subr.mxu0 0.0
        %701 = vmatpush1.msra.mxu0 0.0
        %702 = vmatprep.subr.mxu0 0.0
        %703 = vmatpush1.msra.mxu0 0.0
        %704 = vmatprep.subr.mxu0 0.0
        %705 = vmatpush1.msra.mxu0 0.0
        %706 = vmatprep.subr.mxu0 0.0
        %707 = vmatpush1.msra.mxu0 0.0
        %708 = vmatprep.subr.mxu0 0.0
        %709 = vmatpush1.msra.mxu0 0.0
        %710 = vmatprep.subr.mxu0 0.0
        %711 = vmatpush1.msra.mxu0 0.0
        %712 = vmatprep.subr.mxu0 0.0
        %713 = vmatpush1.msra.mxu0 0.0
        %714 = vmatprep.subr.mxu0 0.0
        %715 = vmatpush1.msra.mxu0 0.0
        %716 = vmatprep.subr.mxu0 0.0
        %717 = vmatpush1.msra.mxu0 0.0
        %718 = vmatprep.subr.mxu0 0.0
        %719 = vmatpush1.msra.mxu0 0.0
        %720 = vmatprep.subr.mxu0 0.0
        %721 = vmatpush1.msra.mxu0 0.0
        %722 = vmatprep.subr.mxu0 0.0
        %723 = vmatpush1.msra.mxu0 0.0
        %724 = vmatprep.subr.mxu0 0.0
        %725 = vmatpush1.msra.mxu0 0.0
        %726 = vmatprep.subr.mxu0 0.0
        %727 = vmatpush1.msra.mxu0 0.0
        %728 = vmatprep.subr.mxu0 0.0
        %729 = vmatpush1.msra.mxu0 0.0
        %730 = vmatprep.subr.mxu0 0.0
        %731 = vmatpush1.msra.mxu0 0.0
        %732 = vmatprep.subr.mxu0 0.0
        %733 = vmatpush1.msra.mxu0 0.0
        %734 = vmatprep.subr.mxu0 0.0
        %735 = vmatpush1.msra.mxu0 0.0
        %736 = vmatprep.subr.mxu0 0.0
        %737 = vmatpush1.msra.mxu0 0.0
        %738 = vmatprep.subr.mxu0 0.0
        %739 = vmatpush1.msra.mxu0 0.0
        %740 = vmatprep.subr.mxu0 0.0
        %741 = vmatpush1.msra.mxu0 0.0
        %742 = vmatprep.subr.mxu0 0.0
        %743 = vmatpush1.msra.mxu0 0.0
        %744 = vmatprep.subr.mxu0 0.0
        %745 = vmatpush1.msra.mxu0 0.0
        %746 = vmatprep.subr.mxu0 0.0
        %747 = vmatpush1.msra.mxu0 0.0
        %748 = vmatprep.subr.mxu0 0.0
        %749 = vmatpush1.msra.mxu0 0.0
        %750 = vmatprep.subr.mxu0 0.0
        %751 = vmatpush1.msra.mxu0 0.0
        %752 = vmatprep.subr.mxu0 0.0
        %753 = vmatpush1.msra.mxu0 0.0
        %754 = vmatprep.mubr.f32.mxu0 0.0
        %755 = vmatmul.mubr.f32.gmra.mrb[0].mxu0 %v676
        %v756 = vpop.f32.mrb[0].mxu0
        %v757 = vadd.f32 0.0, %v756
        %v758 = vpop.f32.mrb[0].mxu0
        %759 = vmatprep.mubr.f32.mxu0 0.0
        %760 = vmatmul.mubr.f32.gmra.mrb[0].mxu0 %v679
        %v761 = vpop.f32.mrb[0].mxu0
        %v762 = vadd.f32 0.0, %v761
        %v763 = vpop.f32.mrb[0].mxu0
        %764 = vmatprep.mubr.f32.mxu0 0.0
        %765 = vmatmul.mubr.f32.gmra.mrb[0].mxu0 %v682
        %v766 = vpop.f32.mrb[0].mxu0
        %v767 = vadd.f32 0.0, %v766
        %v768 = vpop.f32.mrb[0].mxu0
        %769 = vmatprep.mubr.f32.mxu0 0.0
        %770 = vmatmul.mubr.f32.gmra.mrb[0].mxu0 %v685
        %v771 = vpop.f32.mrb[0].mxu0
        %v772 = vadd.f32 0.0, %v771
        %v773 = vpop.f32.mrb[0].mxu0
        %774 = vdwg.mxu0
        %v775 = vmul.f32 %v577, %v757
        %v776 = vmul.f32 %v578, %v762
        %v777 = vmul.f32 %v579, %v767
        %v778 = vmul.f32 %v580, %v772
        %v779 = vld [vmem:[%s5] sm:$0x1]
        %v781 = vlaneseq
        %v782 = vshrl.u32 %v781, 7
        %v783 = vsub.s32 0, %v782
        %v784 = vrot.slane %v779, %v783
        %v786 = vadd.f32 %v775, %v784
        %v787 = vadd.f32 %v776, %v784
        %v788 = vadd.f32 %v777, %v784
        %v789 = vadd.f32 %v778, %v784
        %vm790 = vcmask 523264
        %791 = vst.msk [vmem:[%s260] sm:$0xff] %vm790, %v786
        %792 = vst.msk [vmem:[%s260 + $0x10] sm:$0xff] %vm790, %v787
        %793 = vst.msk [vmem:[%s260 + $0x20] sm:$0xff] %vm790, %v788
        %794 = vst.msk [vmem:[%s260 + $0x30] sm:$0xff] %vm790, %v789
        %799 = vrot.lane.b32.xlu0 %v786, 64
        %v800 = vpop.permute.xlu0 %799
        %801 = vrot.lane.b32.xlu0 %v787, 64
        %v802 = vpop.permute.xlu0 %801
        %803 = vrot.lane.b32.xlu0 %v788, 64
        %v804 = vpop.permute.xlu0 %803
        %805 = vrot.lane.b32.xlu0 %v789, 64
        %v806 = vpop.permute.xlu0 %805
        %s811 = scalar_lea.vmem %s260, 8 [#allocation5]
        %812 = vst.msk [vmem:[%s811] sm:$0xff] %vm790, %v800
        %813 = vst.msk [vmem:[%s811 + $0x10] sm:$0xff] %vm790, %v802
        %814 = vst.msk [vmem:[%s811 + $0x20] sm:$0xff] %vm790, %v804
        %815 = vst.msk [vmem:[%s811 + $0x30] sm:$0xff] %vm790, %v806
        %s816 = sand.u32 %s160, 1
        %s817 = scalar_lea.sflag [#allocation4], %s816
        %s818 = sand.u32 %s160, 1
        %s819 = smul.addr %s818, 64
        %s820 = scalar_lea.vmem [#allocation5], %s819
        // Predicated region
        $region49: #{tpu_custom_call.1} parent=43 // pred_check
          %p821 = pneg %p170
        $region50: #{tpu_custom_call.1} parent=43 // pred_check_branch
          %823 = sbr.rel (%p821) target = $region52
        $region51: #{tpu_custom_call.1} parent=43 // pred_region
          %s824 = smul.u32 4, %s21
          %s826 = ssub.s32 1024, 1024
          %827 = vsyncadd %s817, %s826
          %s828 = smul.addr %s824, 2
          %s829 = smul.addr %s828, 128
          %s830 = scalar_lea.hbm %s6, %s829
          %s831 = sshll.u32 %s820, 4
          %s832 = int_to_ptr.vmem [resolvable:$true] %s831
          %837 = dma.vmem_to_hbm [thread:$0]  %s832, 1024, %s830, %s817, 128, 128, 8
        $region52: #{tpu_custom_call.1} parent=43 // pred_fallthru
          _
      $region44: #{tpu_custom_call.1} parent=5 // pred_fallthru
        _
      %p838 = scmp.le.s32.totalorder 2, %s16
      // Predicated region
      $region53: #{tpu_custom_call.1} parent=5 // pred_check
        %p839 = pneg %p838
      $region54: #{tpu_custom_call.1} parent=5 // pred_check_branch
        %841 = sbr.rel (%p839) target = $region56
      $region55: #{tpu_custom_call.1} parent=5 // pred_region
        %s842 = ssub.s32 %s16, 2
        // Predicated region
        $region57: #{tpu_custom_call.1} parent=55 // pred_check
          %p843 = pneg %p176
        $region58: #{tpu_custom_call.1} parent=55 // pred_check_branch
          %845 = sbr.rel (%p843) target = $region60
        $region59: #{tpu_custom_call.1} parent=55 // pred_region
          %s846 = sand.u32 %s161, 1
          %s847 = scalar_lea.sflag [#allocation4], %s846
          %s848 = sand.u32 %s161, 1
          %s849 = smul.addr %s848, 64
          %s850 = scalar_lea.vmem [#allocation5], %s849
          %851 = dma.done %s847, 1024
        $region60: #{tpu_custom_call.1} parent=55 // pred_fallthru
          _
      $region56: #{tpu_custom_call.1} parent=5 // pred_fallthru
        _
    $region6: #{tpu_custom_call.1} parent=1 // loop_footer
      %s20 = sadd.s32 1, %s16
    $region7: #{tpu_custom_call.1} parent=1 // loop_footer_branch
      %15 = sbr.rel target = $region3
    $region8: #{tpu_custom_call.1} parent=1 // loop_exit
      _
    %852 = vsyncpa [#allocation3], 1
    %s853 = scalar_lea.sflag [#allocation3], 1
    %854 = vsyncpa %s853, 1
    %855 = vsyncpa [#allocation4], 1
    %s856 = scalar_lea.sflag [#allocation4], 1
    %857 = vsyncpa %s856, 1

</llo_original>
